<compile_context>
chip_gen: v6e
topology: v6e:2x2x1
jax: 0.10.0
libtpu: 0.0.40
codegen_flags: <defaults>
</compile_context>

<pallas_src>
import math
from functools import partial

import jax
import jax.numpy as jnp
from jax.experimental import pallas as pl
from jax.experimental.pallas import tpu as pltpu


def _log_marginal_kernel(params_ref, theta_ref, data_ref, out_ref, stats_ref,
                         *, n_total, num_samples):
    """Grid axis 0 tiles the (row) data dimension.

    params_ref: SMEM (2,) = [noise_std, theta0 (pivot)].
    theta_ref : VMEM (S, 1) material-parameter samples (resident across the grid).
    data_ref  : VMEM (2, tr, C) fused [x; y] row tile.
    stats_ref : VMEM (3, 8, C) lane-parallel partial sums of [x*x, x*r, r*r].
    """
    k = pl.program_id(0)

    @pl.when(k == 0)
    def _():
        stats_ref[...] = jnp.zeros_like(stats_ref)

    theta0 = params_ref[1]                       # pivot (scalar, SMEM)
    x = data_ref[0]                              # (tr, C)
    y = data_ref[1]                              # (tr, C)
    r = y - theta0 * x                           # residual around pivot

    tr, C = x.shape

    def fold(v):                                 # (tr, C) -> (8, C): pure VPU adds,
        return jnp.sum(v.reshape(tr // 8, 8, C), axis=0)   # no per-step XLU reduction

    stats_ref[0] += fold(x * x)
    stats_ref[1] += fold(x * r)
    stats_ref[2] += fold(r * r)

    @pl.when(k == pl.num_programs(0) - 1)
    def _():
        def total(v):                            # (8, C) -> (1, 1): one-time XLU reduce
            return jnp.sum(jnp.sum(v, axis=1, keepdims=True), axis=0, keepdims=True)

        sxx = total(stats_ref[0])
        sxr = total(stats_ref[1])
        srr = total(stats_ref[2])

        sigma = params_ref[0]
        dtheta = theta_ref[...] - params_ref[1]                     # (S, 1)
        sse = srr - 2.0 * dtheta * sxr + dtheta * dtheta * sxx      # (S, 1)

        var = jnp.full((1, 1), 1.0, jnp.float32) * (sigma * sigma)  # (1, 1)
        inv_var = pl.reciprocal(var, approx=False)
        log_probs = (-0.5 * sse * inv_var
                     - (0.5 * float(n_total)) * jnp.log(2.0 * math.pi * var))  # (S, 1)

        # logsumexp over the S samples (sublane axis), numerically stable.
        m = jnp.max(log_probs, axis=0, keepdims=True)                       # (1, 1)
        sum_exp = jnp.sum(jnp.exp(log_probs - m), axis=0, keepdims=True)    # (1, 1)
        lse = m + jnp.log(sum_exp)
        out_ref[...] = math.log(1.0 / float(num_samples)) + lse


def _round_up(a, b):
    return ((a + b - 1) // b) * b


def independent_log_marginal_likelihood(theta_samples, x_data, y_data, noise_std,
                                        *, lanes=512, max_rows_per_block=1024):
    """theta_samples: (S, 1); x_data/y_data: (N,); noise_std: scalar -> scalar log marginal."""
    S = theta_samples.shape[0]
    N = x_data.shape[0]
    C = int(lanes)

    rows_needed = _round_up(max(pl.cdiv(N, C), 1), 8)
    tr = min(rows_needed, max_rows_per_block)     # rows per grid step (multiple of 8)
    R = _round_up(rows_needed, tr)                # total padded rows (multiple of tr)
    n_pad = R * C
    grid = (R // tr,)                             # collapses to (1,) for small N

    theta = theta_samples.astype(jnp.float32).reshape(S, 1)
    theta0 = jnp.mean(theta)                      # pivot -> well-conditioned statistics
    params = jnp.stack([jnp.asarray(noise_std, jnp.float32),
                        theta0.astype(jnp.float32)])            # (2,) SMEM scalars

    # Zero padding is exact: padded x = y = 0 contributes 0 to all three statistics.
    x_p = jnp.pad(x_data.astype(jnp.float32), (0, n_pad - N)).reshape(R, C)
    y_p = jnp.pad(y_data.astype(jnp.float32), (0, n_pad - N)).reshape(R, C)
    data = jnp.stack([x_p, y_p])                  # (2, R, C) fused x/y stream

    kernel = partial(_log_marginal_kernel, n_total=N, num_samples=S)

    out = pl.pallas_call(
        kernel,
        out_shape=jax.ShapeDtypeStruct((1, 1), jnp.float32),
        grid=grid,
        in_specs=[
            pl.BlockSpec(memory_space=pltpu.MemorySpace.SMEM),   # [sigma, theta0]
            pl.BlockSpec((S, 1), lambda k: (0, 0)),              # theta, resident
            pl.BlockSpec((2, tr, C), lambda k: (0, k, 0)),       # fused x/y row tile
        ],
        out_specs=pl.BlockSpec((1, 1), lambda k: (0, 0)),        # scalar output, resident
        scratch_shapes=[pltpu.VMEM((3, 8, C), jnp.float32)],     # partial-sum accumulators
        compiler_params=pltpu.CompilerParams(
            dimension_semantics=("arbitrary",),                  # N is a reduction axis
            vmem_limit_bytes=32 * 1024 * 1024),                  # safe on v5e/v6e/v7x
    )(params, theta, data)
    return out[0, 0]


def _reference(theta_samples, x_data, y_data, noise_std):
    """Pure-JAX reference mirroring the PyTorch module's _log_prob."""
    S = theta_samples.shape[0]
    N = x_data.shape[0]
    pred = theta_samples * x_data[None, :]                       # (S, N)
    resid = (y_data[None, :] - pred) / noise_std
    log_probs = -0.5 * jnp.sum(resid * resid, axis=-1) \
                - 0.5 * N * jnp.log(2.0 * jnp.pi * noise_std ** 2)   # (S,)
    return jnp.log(1.0 / S) + jax.scipy.special.logsumexp(log_probs)


if __name__ == "__main__":
    key = jax.random.PRNGKey(0)
    k_theta, k_x, k_noise = jax.random.split(key, 3)

    S = 8            # num_material_parameter_samples
    N = 1024         # data points in the selected data set
    noise_std = 0.1

    # prior_material_parameters.sample((S, 1)) -> deterministic synthetic prior samples
    theta_samples = 1.0 + 0.5 * jax.random.normal(k_theta, (S, 1), dtype=jnp.float32)

    # synthetic data set (data_set_index selects this one); true theta = 1.2
    x_data = jax.random.uniform(k_x, (N,), dtype=jnp.float32)
    y_data = 1.2 * x_data + noise_std * jax.random.normal(k_noise, (N,), dtype=jnp.float32)

    result = independent_log_marginal_likelihood(theta_samples, x_data, y_data, noise_std)
    result = jax.block_until_ready(result)

    ref = _reference(theta_samples, x_data, y_data, noise_std)
    assert jnp.allclose(result, ref, rtol=1e-4, atol=1e-3), (result, ref)

    print("KERNEL_OK")
</pallas_src>

<mosaic_0001>
module attributes {stable_mosaic.version = 11 : i64} {
  func.func @_log_marginal_kernel(%arg0: i32, %arg1: memref<2xf32, #tpu.memory_space<smem>>, %arg2: memref<8x1xf32, #tpu.memory_space<vmem>>, %arg3: memref<2x8x512xf32, #tpu.memory_space<vmem>>, %arg4: memref<1x1xf32, #tpu.memory_space<vmem>>, %arg5: memref<3x8x512xf32, #tpu.memory_space<vmem>>) attributes {dimension_semantics = [#tpu.dimension_semantics<arbitrary>], iteration_bounds = array<i64: 1>, scalar_prefetch = 0 : i64, scratch_operands = 1 : i64, tpu.core_type = #tpu.core_type<tc>, window_params = [{transform_indices = @transform_0, window_bounds = array<i64: 2>}, {pipeline_mode = #tpu.pipeline_mode<synchronous>, transform_indices = @transform_1, window_bounds = array<i64: 8, 1>}, {transform_indices = @transform_2, window_bounds = array<i64: 2, 8, 512>}, {pipeline_mode = #tpu.pipeline_mode<synchronous>, transform_indices = @transform_3, window_bounds = array<i64: 1, 1>}]} {
    %c0_i32 = arith.constant 0 : i32
    %0 = arith.cmpi eq, %arg0, %c0_i32 : i32
    %1 = arith.extui %0 : i1 to i32
    %c0_i32_0 = arith.constant 0 : i32
    %2 = arith.cmpi ne, %1, %c0_i32_0 : i32
    scf.if %2 {
      %cst_27 = arith.constant 0.000000e+00 : f32
      %41 = vector.broadcast %cst_27 : f32 to vector<3x8x512xf32>
      %c0_28 = arith.constant 0 : index
      %c0_29 = arith.constant 0 : index
      %c0_30 = arith.constant 0 : index
      %42 = vector.load %arg5[%c0_28, %c0_29, %c0_30] : memref<3x8x512xf32, #tpu.memory_space<vmem>>, vector<3x8x512xf32>
      tpu.vector_store %arg5[%c0_28, %c0_29, %c0_30], %41 {strides = array<i32>} : memref<3x8x512xf32, #tpu.memory_space<vmem>>, vector<3x8x512xf32>,
    } else {
    }
    %c1 = arith.constant 1 : index
    %3 = memref.load %arg1[%c1] : memref<2xf32, #tpu.memory_space<smem>>
    %c0 = arith.constant 0 : index
    %c0_1 = arith.constant 0 : index
    %c0_2 = arith.constant 0 : index
    %4 = vector.load %arg3[%c0, %c0_1, %c0_2] : memref<2x8x512xf32, #tpu.memory_space<vmem>>, vector<1x8x512xf32>
    %5 = vector.shape_cast %4 : vector<1x8x512xf32> to vector<8x512xf32>
    %c1_3 = arith.constant 1 : index
    %c0_4 = arith.constant 0 : index
    %c0_5 = arith.constant 0 : index
    %6 = vector.load %arg3[%c1_3, %c0_4, %c0_5] : memref<2x8x512xf32, #tpu.memory_space<vmem>>, vector<1x8x512xf32>
    %7 = vector.shape_cast %6 : vector<1x8x512xf32> to vector<8x512xf32>
    %8 = vector.broadcast %3 : f32 to vector<8x512xf32>
    %9 = arith.mulf %8, %5 : vector<8x512xf32>
    %10 = arith.subf %7, %9 : vector<8x512xf32>
    %c0_6 = arith.constant 0 : index
    %c0_7 = arith.constant 0 : index
    %c0_8 = arith.constant 0 : index
    %11 = vector.load %arg5[%c0_6, %c0_7, %c0_8] : memref<3x8x512xf32, #tpu.memory_space<vmem>>, vector<1x8x512xf32>
    %12 = vector.shape_cast %11 : vector<1x8x512xf32> to vector<8x512xf32>
    %13 = arith.mulf %5, %5 : vector<8x512xf32>
    %14 = vector.shape_cast %13 : vector<8x512xf32> to vector<1x8x512xf32>
    %cst = arith.constant dense<0.000000e+00> : vector<8x512xf32>
    %15 = vector.multi_reduction <add>, %14, %cst [0] : vector<1x8x512xf32> to vector<8x512xf32>
    %16 = arith.addf %12, %15 : vector<8x512xf32>
    %c0_9 = arith.constant 0 : index
    %c0_10 = arith.constant 0 : index
    %c0_11 = arith.constant 0 : index
    %17 = vector.load %arg5[%c0_9, %c0_10, %c0_11] : memref<3x8x512xf32, #tpu.memory_space<vmem>>, vector<1x8x512xf32>
    %18 = vector.shape_cast %17 : vector<1x8x512xf32> to vector<8x512xf32>
    %19 = vector.shape_cast %16 : vector<8x512xf32> to vector<1x8x512xf32>
    tpu.vector_store %arg5[%c0_9, %c0_10, %c0_11], %19 {strides = array<i32>} : memref<3x8x512xf32, #tpu.memory_space<vmem>>, vector<1x8x512xf32>,
    %c1_12 = arith.constant 1 : index
    %c0_13 = arith.constant 0 : index
    %c0_14 = arith.constant 0 : index
    %20 = vector.load %arg5[%c1_12, %c0_13, %c0_14] : memref<3x8x512xf32, #tpu.memory_space<vmem>>, vector<1x8x512xf32>
    %21 = vector.shape_cast %20 : vector<1x8x512xf32> to vector<8x512xf32>
    %22 = arith.mulf %5, %10 : vector<8x512xf32>
    %23 = vector.shape_cast %22 : vector<8x512xf32> to vector<1x8x512xf32>
    %cst_15 = arith.constant dense<0.000000e+00> : vector<8x512xf32>
    %24 = vector.multi_reduction <add>, %23, %cst_15 [0] : vector<1x8x512xf32> to vector<8x512xf32>
    %25 = arith.addf %21, %24 : vector<8x512xf32>
    %c1_16 = arith.constant 1 : index
    %c0_17 = arith.constant 0 : index
    %c0_18 = arith.constant 0 : index
    %26 = vector.load %arg5[%c1_16, %c0_17, %c0_18] : memref<3x8x512xf32, #tpu.memory_space<vmem>>, vector<1x8x512xf32>
    %27 = vector.shape_cast %26 : vector<1x8x512xf32> to vector<8x512xf32>
    %28 = vector.shape_cast %25 : vector<8x512xf32> to vector<1x8x512xf32>
    tpu.vector_store %arg5[%c1_16, %c0_17, %c0_18], %28 {strides = array<i32>} : memref<3x8x512xf32, #tpu.memory_space<vmem>>, vector<1x8x512xf32>,
    %c2 = arith.constant 2 : index
    %c0_19 = arith.constant 0 : index
    %c0_20 = arith.constant 0 : index
    %29 = vector.load %arg5[%c2, %c0_19, %c0_20] : memref<3x8x512xf32, #tpu.memory_space<vmem>>, vector<1x8x512xf32>
    %30 = vector.shape_cast %29 : vector<1x8x512xf32> to vector<8x512xf32>
    %31 = arith.mulf %10, %10 : vector<8x512xf32>
    %32 = vector.shape_cast %31 : vector<8x512xf32> to vector<1x8x512xf32>
    %cst_21 = arith.constant dense<0.000000e+00> : vector<8x512xf32>
    %33 = vector.multi_reduction <add>, %32, %cst_21 [0] : vector<1x8x512xf32> to vector<8x512xf32>
    %34 = arith.addf %30, %33 : vector<8x512xf32>
    %c2_22 = arith.constant 2 : index
    %c0_23 = arith.constant 0 : index
    %c0_24 = arith.constant 0 : index
    %35 = vector.load %arg5[%c2_22, %c0_23, %c0_24] : memref<3x8x512xf32, #tpu.memory_space<vmem>>, vector<1x8x512xf32>
    %36 = vector.shape_cast %35 : vector<1x8x512xf32> to vector<8x512xf32>
    %37 = vector.shape_cast %34 : vector<8x512xf32> to vector<1x8x512xf32>
    tpu.vector_store %arg5[%c2_22, %c0_23, %c0_24], %37 {strides = array<i32>} : memref<3x8x512xf32, #tpu.memory_space<vmem>>, vector<1x8x512xf32>,
    %c0_i32_25 = arith.constant 0 : i32
    %38 = arith.cmpi eq, %arg0, %c0_i32_25 : i32
    %39 = arith.extui %38 : i1 to i32
    %c0_i32_26 = arith.constant 0 : i32
    %40 = arith.cmpi ne, %39, %c0_i32_26 : i32
    scf.if %40 {
      %c0_27 = arith.constant 0 : index
      %c0_28 = arith.constant 0 : index
      %c0_29 = arith.constant 0 : index
      %41 = vector.load %arg5[%c0_27, %c0_28, %c0_29] : memref<3x8x512xf32, #tpu.memory_space<vmem>>, vector<1x8x512xf32>
      %42 = vector.shape_cast %41 : vector<1x8x512xf32> to vector<8x512xf32>
      %cst_30 = arith.constant dense<0.000000e+00> : vector<8xf32>
      %43 = vector.multi_reduction <add>, %42, %cst_30 [1] : vector<8x512xf32> to vector<8xf32>
      %44 = vector.shape_cast %43 : vector<8xf32> to vector<8x1xf32>
      %cst_31 = arith.constant dense<0.000000e+00> : vector<1xf32>
      %45 = vector.multi_reduction <add>, %44, %cst_31 [0] : vector<8x1xf32> to vector<1xf32>
      %46 = vector.shape_cast %45 : vector<1xf32> to vector<1x1xf32>
      %c1_32 = arith.constant 1 : index
      %c0_33 = arith.constant 0 : index
      %c0_34 = arith.constant 0 : index
      %47 = vector.load %arg5[%c1_32, %c0_33, %c0_34] : memref<3x8x512xf32, #tpu.memory_space<vmem>>, vector<1x8x512xf32>
      %48 = vector.shape_cast %47 : vector<1x8x512xf32> to vector<8x512xf32>
      %cst_35 = arith.constant dense<0.000000e+00> : vector<8xf32>
      %49 = vector.multi_reduction <add>, %48, %cst_35 [1] : vector<8x512xf32> to vector<8xf32>
      %50 = vector.shape_cast %49 : vector<8xf32> to vector<8x1xf32>
      %cst_36 = arith.constant dense<0.000000e+00> : vector<1xf32>
      %51 = vector.multi_reduction <add>, %50, %cst_36 [0] : vector<8x1xf32> to vector<1xf32>
      %52 = vector.shape_cast %51 : vector<1xf32> to vector<1x1xf32>
      %c2_37 = arith.constant 2 : index
      %c0_38 = arith.constant 0 : index
      %c0_39 = arith.constant 0 : index
      %53 = vector.load %arg5[%c2_37, %c0_38, %c0_39] : memref<3x8x512xf32, #tpu.memory_space<vmem>>, vector<1x8x512xf32>
      %54 = vector.shape_cast %53 : vector<1x8x512xf32> to vector<8x512xf32>
      %cst_40 = arith.constant dense<0.000000e+00> : vector<8xf32>
      %55 = vector.multi_reduction <add>, %54, %cst_40 [1] : vector<8x512xf32> to vector<8xf32>
      %56 = vector.shape_cast %55 : vector<8xf32> to vector<8x1xf32>
      %cst_41 = arith.constant dense<0.000000e+00> : vector<1xf32>
      %57 = vector.multi_reduction <add>, %56, %cst_41 [0] : vector<8x1xf32> to vector<1xf32>
      %58 = vector.shape_cast %57 : vector<1xf32> to vector<1x1xf32>
      %c0_42 = arith.constant 0 : index
      %59 = memref.load %arg1[%c0_42] : memref<2xf32, #tpu.memory_space<smem>>
      %c0_43 = arith.constant 0 : index
      %c0_44 = arith.constant 0 : index
      %60 = vector.load %arg2[%c0_43, %c0_44] : memref<8x1xf32, #tpu.memory_space<vmem>>, vector<8x1xf32>
      %c1_45 = arith.constant 1 : index
      %61 = memref.load %arg1[%c1_45] : memref<2xf32, #tpu.memory_space<smem>>
      %62 = vector.broadcast %61 : f32 to vector<8x1xf32>
      %63 = arith.subf %60, %62 : vector<8x1xf32>
      %cst_46 = arith.constant 2.000000e+00 : f32
      %64 = vector.broadcast %cst_46 : f32 to vector<8x1xf32>
      %65 = arith.mulf %64, %63 : vector<8x1xf32>
      %66 = vector.broadcast %52 : vector<1x1xf32> to vector<8x1xf32>
      %67 = arith.mulf %65, %66 : vector<8x1xf32>
      %68 = vector.broadcast %58 : vector<1x1xf32> to vector<8x1xf32>
      %69 = arith.subf %68, %67 : vector<8x1xf32>
      %70 = arith.mulf %63, %63 : vector<8x1xf32>
      %71 = vector.broadcast %46 : vector<1x1xf32> to vector<8x1xf32>
      %72 = arith.mulf %70, %71 : vector<8x1xf32>
      %73 = arith.addf %69, %72 : vector<8x1xf32>
      %cst_47 = arith.constant 1.000000e+00 : f32
      %74 = vector.broadcast %cst_47 : f32 to vector<1x1xf32>
      %75 = arith.mulf %59, %59 : f32
      %76 = vector.broadcast %75 : f32 to vector<1x1xf32>
      %77 = arith.mulf %74, %76 : vector<1x1xf32>
      %78 = tpu.reciprocal %77 : vector<1x1xf32> -> vector<1x1xf32>
      %cst_48 = arith.constant -5.000000e-01 : f32
      %79 = vector.broadcast %cst_48 : f32 to vector<8x1xf32>
      %80 = arith.mulf %79, %73 : vector<8x1xf32>
      %81 = vector.broadcast %78 : vector<1x1xf32> to vector<8x1xf32>
      %82 = arith.mulf %80, %81 : vector<8x1xf32>
      %cst_49 = arith.constant 6.28318548 : f32
      %83 = vector.broadcast %cst_49 : f32 to vector<1x1xf32>
      %84 = arith.mulf %83, %77 : vector<1x1xf32>
      %85 = math.log %84 : vector<1x1xf32>
      %cst_50 = arith.constant 5.120000e+02 : f32
      %86 = vector.broadcast %cst_50 : f32 to vector<1x1xf32>
      %87 = arith.mulf %86, %85 : vector<1x1xf32>
      %88 = vector.broadcast %87 : vector<1x1xf32> to vector<8x1xf32>
      %89 = arith.subf %82, %88 : vector<8x1xf32>
      %cst_51 = arith.constant dense<0xFF800000> : vector<1xf32>
      %90 = vector.multi_reduction <maximumf>, %89, %cst_51 [0] : vector<8x1xf32> to vector<1xf32>
      %91 = vector.shape_cast %90 : vector<1xf32> to vector<1x1xf32>
      %92 = vector.broadcast %91 : vector<1x1xf32> to vector<8x1xf32>
      %93 = arith.subf %89, %92 : vector<8x1xf32>
      %94 = math.exp %93 : vector<8x1xf32>
      %cst_52 = arith.constant dense<0.000000e+00> : vector<1xf32>
      %95 = vector.multi_reduction <add>, %94, %cst_52 [0] : vector<8x1xf32> to vector<1xf32>
      %96 = vector.shape_cast %95 : vector<1xf32> to vector<1x1xf32>
      %97 = math.log %96 : vector<1x1xf32>
      %98 = arith.addf %91, %97 : vector<1x1xf32>
      %cst_53 = arith.constant -2.07944155 : f32
      %99 = vector.broadcast %cst_53 : f32 to vector<1x1xf32>
      %100 = arith.addf %99, %98 : vector<1x1xf32>
      %c0_54 = arith.constant 0 : index
      %c0_55 = arith.constant 0 : index
      %101 = vector.load %arg4[%c0_54, %c0_55] : memref<1x1xf32, #tpu.memory_space<vmem>>, vector<1x1xf32>
      tpu.vector_store %arg4[%c0_54, %c0_55], %100 {strides = array<i32>} : memref<1x1xf32, #tpu.memory_space<vmem>>, vector<1x1xf32>,
    } else {
    }
    return
  }
  func.func @transform_0(%arg0: i32) -> i32 {
    %c0_i32 = arith.constant 0 : i32
    %c0_i32_0 = arith.constant 0 : i32
    return %c0_i32 : i32
  }
  func.func @transform_1(%arg0: i32) -> (i32, i32) {
    %c0_i32 = arith.constant 0 : i32
    %c0_i32_0 = arith.constant 0 : i32
    %c0_i32_1 = arith.constant 0 : i32
    return %c0_i32, %c0_i32_0 : i32, i32
  }
  func.func @transform_2(%arg0: i32) -> (i32, i32, i32) {
    %c0_i32 = arith.constant 0 : i32
    %c0_i32_0 = arith.constant 0 : i32
    %c0_i32_1 = arith.constant 0 : i32
    return %c0_i32, %arg0, %c0_i32_0 : i32, i32, i32
  }
  func.func @transform_3(%arg0: i32) -> (i32, i32) {
    %c0_i32 = arith.constant 0 : i32
    %c0_i32_0 = arith.constant 0 : i32
    %c0_i32_1 = arith.constant 0 : i32
    return %c0_i32, %c0_i32_0 : i32, i32
  }
}

</mosaic_0001>

<llo_original>
// kernel: tpu_custom_call.1
$region0: #{tpu_custom_call.1}
  #allocation0 [shape = 'u32[]', space=smem, size = 0x4, offset = 0x4, fixed_abs, tag = 'smem constant byte address 0x4 - core index']
  #allocation1 [shape = 'u32[144,128]{1,0:T(1,128)}', space=vmem, size = 0x12000, scoped, tag = 'internal scratch']
  #allocation2 [shape = 'f32[3,8,512]{2,1,0:T(8,128)}', space=vmem, size = 0xc000, scoped, tag = 'scratch operand']
  %s0 = inlined_call_operand.vmem [shape: f32[2], index: 0, kind: input, shape index: {}]
  %s1 = inlined_call_operand.vmem [shape: f32[8,1], index: 1, kind: input, shape index: {}]
  %s2 = inlined_call_operand.hbm [shape: f32[2,8,512], index: 2, kind: input, shape index: {}]
  %s3 = inlined_call_operand.hbm [shape: f32[1,1], index: 3, kind: output, shape index: {}]
  %s4 = sld [smem:[#allocation0]]
  $region38: #{tpu_custom_call.1} parent=0
    _
  %s6 = ssub.s32 1, %s4
  %s7 = scalar_select 0, %s6, %s4
  $region1: #{tpu_custom_call.1} parent=0
    #allocation3 [shape = 'u8[512]{0}', space=smem, size = 0x200, scoped, tag = 'input window, operand 0, single buffered']
    #allocation4 [shape = 's32[1]{0}', space=sflag, size = 0x4, scoped, tag = 'scoped memory for tpu_custom_call.1']
    #allocation5 [shape = 's32[1]{0}', space=sflag, size = 0x4, scoped, tag = 'scoped memory for tpu_custom_call.1']
    #allocation6 [shape = 's32[1]{0}', space=sflag, size = 0x4, scoped, tag = 'scoped memory for tpu_custom_call.1']
    #allocation7 [shape = 'u8[32768]{0}', space=vmem, size = 0x8000, scoped, tag = 'input window, operand 2, single buffered']
    #allocation8 [shape = 'u8[512]{0}', space=vmem, size = 0x400, scoped, tag = 'output window, operand 0, single buffered']
    %8 = vsyncpa [#allocation6], 0
    %9 = vsyncpa [#allocation4], 0
    %10 = vsyncpa [#allocation5], 0
    // Predicated region
    $region2: #{tpu_custom_call.1} parent=1 // pred_check
      _
    $region3: #{tpu_custom_call.1} parent=1 // pred_check_branch
      %12 = sbr.rel (0) target = $region5
    $region4: #{tpu_custom_call.1} parent=1 // pred_region
      %s14 = ssub.s32 16, 16
      %15 = vsyncadd [#allocation6], %s14
      %s17 = sshll.u32 %s0, 4
      %s18 = int_to_ptr.vmem [resolvable:$true] %s17
      %20 = dma.vmem_to_smem %s18, 16, [#allocation3], [#allocation6]
    $region5: #{tpu_custom_call.1} parent=1 // pred_fallthru
      _
    // Predicated region
    $region6: #{tpu_custom_call.1} parent=1 // pred_check
      _
    $region7: #{tpu_custom_call.1} parent=1 // pred_check_branch
      %22 = sbr.rel (0) target = $region9
    $region8: #{tpu_custom_call.1} parent=1 // pred_region
      _
    $region9: #{tpu_custom_call.1} parent=1 // pred_fallthru
      _
    // Predicated region
    $region10: #{tpu_custom_call.1} parent=1 // pred_check
      _
    $region11: #{tpu_custom_call.1} parent=1 // pred_check_branch
      %24 = sbr.rel (0) target = $region13
    $region12: #{tpu_custom_call.1} parent=1 // pred_region
      %s26 = ssub.s32 1024, 1024
      %27 = vsyncadd [#allocation4], %s26
      %s28 = sshll.u32 [#allocation7], 4
      %s29 = int_to_ptr.vmem [resolvable:$true] %s28
      %34 = dma.hbm_to_vmem [thread:$0]  %s2, 1024, %s29, [#allocation4], 512, 512, 32
    $region13: #{tpu_custom_call.1} parent=1 // pred_fallthru
      _
    // Predicated region
    $region14: #{tpu_custom_call.1} parent=1 // pred_check
      _
    $region15: #{tpu_custom_call.1} parent=1 // pred_check_branch
      %36 = sbr.rel (0) target = $region17
    $region16: #{tpu_custom_call.1} parent=1 // pred_region
      %37 = dma.done [#allocation6], 16
    $region17: #{tpu_custom_call.1} parent=1 // pred_fallthru
      _
    // Predicated region
    $region18: #{tpu_custom_call.1} parent=1 // pred_check
      _
    $region19: #{tpu_custom_call.1} parent=1 // pred_check_branch
      %39 = sbr.rel (0) target = $region21
    $region20: #{tpu_custom_call.1} parent=1 // pred_region
      %40 = dma.done [#allocation4], 1024
    $region21: #{tpu_custom_call.1} parent=1 // pred_fallthru
      _
    %41 = sfence
    %p42 = scmp.eq.s32.totalorder 0, 0
    // Predicated region
    $region22: #{tpu_custom_call.1} parent=1 // pred_check
      %p43 = pneg %p42
    $region23: #{tpu_custom_call.1} parent=1 // pred_check_branch
      %45 = sbr.rel (%p43) target = $region25
    $region24: #{tpu_custom_call.1} parent=1 // pred_region
      %46 = vst [vmem:[#allocation2] sm:$0xff] 0.0
      %47 = vst [vmem:[#allocation2 + $0x8] sm:$0xff] 0.0
      %48 = vst [vmem:[#allocation2 + $0x10] sm:$0xff] 0.0
      %49 = vst [vmem:[#allocation2 + $0x18] sm:$0xff] 0.0
      %50 = vst [vmem:[#allocation2 + $0x20] sm:$0xff] 0.0
      %51 = vst [vmem:[#allocation2 + $0x28] sm:$0xff] 0.0
      %52 = vst [vmem:[#allocation2 + $0x30] sm:$0xff] 0.0
      %53 = vst [vmem:[#allocation2 + $0x38] sm:$0xff] 0.0
      %54 = vst [vmem:[#allocation2 + $0x40] sm:$0xff] 0.0
      %55 = vst [vmem:[#allocation2 + $0x48] sm:$0xff] 0.0
      %56 = vst [vmem:[#allocation2 + $0x50] sm:$0xff] 0.0
      %57 = vst [vmem:[#allocation2 + $0x58] sm:$0xff] 0.0
    $region25: #{tpu_custom_call.1} parent=1 // pred_fallthru
      _
    %s58 = sld [smem:[#allocation3 + $0x1]]
    %v59 = vld [vmem:[#allocation7] sm:$0xff]
    %v60 = vld [vmem:[#allocation7 + $0x8] sm:$0xff]
    %v61 = vld [vmem:[#allocation7 + $0x10] sm:$0xff]
    %v62 = vld [vmem:[#allocation7 + $0x18] sm:$0xff]
    %s63 = scalar_lea.vmem [#allocation7], 32
    %v64 = vld [vmem:[%s63] sm:$0xff]
    %v65 = vld [vmem:[%s63 + $0x8] sm:$0xff]
    %v66 = vld [vmem:[%s63 + $0x10] sm:$0xff]
    %v67 = vld [vmem:[%s63 + $0x18] sm:$0xff]
    %v68 = vstv %s58
    %v69 = vmul.f32 %v68, %v59
    %v70 = vmul.f32 %v68, %v60
    %v71 = vmul.f32 %v68, %v61
    %v72 = vmul.f32 %v68, %v62
    %v73 = vsub.f32 %v64, %v69
    %v74 = vsub.f32 %v65, %v70
    %v75 = vsub.f32 %v66, %v71
    %v76 = vsub.f32 %v67, %v72
    %v77 = vld [vmem:[#allocation2] sm:$0xff]
    %v78 = vld [vmem:[#allocation2 + $0x8] sm:$0xff]
    %v79 = vld [vmem:[#allocation2 + $0x10] sm:$0xff]
    %v80 = vld [vmem:[#allocation2 + $0x18] sm:$0xff]
    %v81 = vmul.f32 %v59, %v59
    %v82 = vmul.f32 %v60, %v60
    %v83 = vmul.f32 %v61, %v61
    %v84 = vmul.f32 %v62, %v62
    %v85 = vadd.f32 %v81, 0.0
    %v86 = vadd.f32 %v82, 0.0
    %v87 = vadd.f32 %v83, 0.0
    %v88 = vadd.f32 %v84, 0.0
    %v89 = vadd.f32 %v77, %v85
    %v90 = vadd.f32 %v78, %v86
    %v91 = vadd.f32 %v79, %v87
    %v92 = vadd.f32 %v80, %v88
    %93 = vst [vmem:[#allocation2] sm:$0xff] %v89
    %94 = vst [vmem:[#allocation2 + $0x8] sm:$0xff] %v90
    %95 = vst [vmem:[#allocation2 + $0x10] sm:$0xff] %v91
    %96 = vst [vmem:[#allocation2 + $0x18] sm:$0xff] %v92
    %s97 = scalar_lea.vmem [#allocation2], 32
    %v98 = vld [vmem:[%s97] sm:$0xff]
    %v99 = vld [vmem:[%s97 + $0x8] sm:$0xff]
    %v100 = vld [vmem:[%s97 + $0x10] sm:$0xff]
    %v101 = vld [vmem:[%s97 + $0x18] sm:$0xff]
    %v102 = vmul.f32 %v59, %v73
    %v103 = vmul.f32 %v60, %v74
    %v104 = vmul.f32 %v61, %v75
    %v105 = vmul.f32 %v62, %v76
    %v106 = vadd.f32 %v102, 0.0
    %v107 = vadd.f32 %v103, 0.0
    %v108 = vadd.f32 %v104, 0.0
    %v109 = vadd.f32 %v105, 0.0
    %v110 = vadd.f32 %v98, %v106
    %v111 = vadd.f32 %v99, %v107
    %v112 = vadd.f32 %v100, %v108
    %v113 = vadd.f32 %v101, %v109
    %114 = vst [vmem:[%s97] sm:$0xff] %v110
    %115 = vst [vmem:[%s97 + $0x8] sm:$0xff] %v111
    %116 = vst [vmem:[%s97 + $0x10] sm:$0xff] %v112
    %117 = vst [vmem:[%s97 + $0x18] sm:$0xff] %v113
    %s118 = scalar_lea.vmem [#allocation2], 64
    %v119 = vld [vmem:[%s118] sm:$0xff]
    %v120 = vld [vmem:[%s118 + $0x8] sm:$0xff]
    %v121 = vld [vmem:[%s118 + $0x10] sm:$0xff]
    %v122 = vld [vmem:[%s118 + $0x18] sm:$0xff]
    %v123 = vmul.f32 %v73, %v73
    %v124 = vmul.f32 %v74, %v74
    %v125 = vmul.f32 %v75, %v75
    %v126 = vmul.f32 %v76, %v76
    %v127 = vadd.f32 %v123, 0.0
    %v128 = vadd.f32 %v124, 0.0
    %v129 = vadd.f32 %v125, 0.0
    %v130 = vadd.f32 %v126, 0.0
    %v131 = vadd.f32 %v119, %v127
    %v132 = vadd.f32 %v120, %v128
    %v133 = vadd.f32 %v121, %v129
    %v134 = vadd.f32 %v122, %v130
    %135 = vst [vmem:[%s118] sm:$0xff] %v131
    %136 = vst [vmem:[%s118 + $0x8] sm:$0xff] %v132
    %137 = vst [vmem:[%s118 + $0x10] sm:$0xff] %v133
    %138 = vst [vmem:[%s118 + $0x18] sm:$0xff] %v134
    // Predicated region
    $region26: #{tpu_custom_call.1} parent=1 // pred_check
      %p139 = pneg %p42
    $region27: #{tpu_custom_call.1} parent=1 // pred_check_branch
      %141 = sbr.rel (%p139) target = $region29
    $region28: #{tpu_custom_call.1} parent=1 // pred_region
      %v142 = vld [vmem:[#allocation2] sm:$0xff]
      %v143 = vld [vmem:[#allocation2 + $0x8] sm:$0xff]
      %v144 = vld [vmem:[#allocation2 + $0x10] sm:$0xff]
      %v145 = vld [vmem:[#allocation2 + $0x18] sm:$0xff]
      %v146 = vadd.f32 %v142, %v143
      %v147 = vadd.f32 %v146, %v144
      %v148 = vadd.f32 %v147, %v145
      %149 = vadd.xlane.f32.xlu0 %v148
      %v150 = vpop.xlane.xlu0 %149
      %v151 = vrot.slane %v150, 4
      %v152 = vadd.f32 %v150, %v151
      %v153 = vrot.slane %v152, 2
      %v154 = vadd.f32 %v152, %v153
      %v155 = vrot.slane %v154, 1
      %v156 = vadd.f32 %v154, %v155
      %v157 = vld [vmem:[%s97] sm:$0xff]
      %v158 = vld [vmem:[%s97 + $0x8] sm:$0xff]
      %v159 = vld [vmem:[%s97 + $0x10] sm:$0xff]
      %v160 = vld [vmem:[%s97 + $0x18] sm:$0xff]
      %v161 = vadd.f32 %v157, %v158
      %v162 = vadd.f32 %v161, %v159
      %v163 = vadd.f32 %v162, %v160
      %164 = vadd.xlane.f32.xlu0 %v163
      %v165 = vpop.xlane.xlu0 %164
      %v166 = vrot.slane %v165, 4
      %v167 = vadd.f32 %v165, %v166
      %v168 = vrot.slane %v167, 2
      %v169 = vadd.f32 %v167, %v168
      %v170 = vrot.slane %v169, 1
      %v171 = vadd.f32 %v169, %v170
      %v172 = vld [vmem:[%s118] sm:$0xff]
      %v173 = vld [vmem:[%s118 + $0x8] sm:$0xff]
      %v174 = vld [vmem:[%s118 + $0x10] sm:$0xff]
      %v175 = vld [vmem:[%s118 + $0x18] sm:$0xff]
      %v176 = vadd.f32 %v172, %v173
      %v177 = vadd.f32 %v176, %v174
      %v178 = vadd.f32 %v177, %v175
      %179 = vadd.xlane.f32.xlu0 %v178
      %v180 = vpop.xlane.xlu0 %179
      %v181 = vrot.slane %v180, 4
      %v182 = vadd.f32 %v180, %v181
      %v183 = vrot.slane %v182, 2
      %v184 = vadd.f32 %v182, %v183
      %v185 = vrot.slane %v184, 1
      %v186 = vadd.f32 %v184, %v185
      %s187 = sld [smem:[#allocation3]]
      %v188 = vld [vmem:[%s1] sm:$0xff]
      %s189 = sld [smem:[#allocation3 + $0x1]]
      %v190 = vstv %s189
      %v191 = vsub.f32 %v188, %v190
      %v192 = vmul.f32 %v191, 2.0
      %v193 = vmul.f32 %v192, %v171
      %v194 = vsub.f32 %v186, %v193
      %v195 = vmul.f32 %v191, %v191
      %v196 = vmul.f32 %v195, %v156
      %v197 = vadd.f32 %v194, %v196
      %s198 = smul.f32 %s187, %s187
      %v199 = vstv %s198
      %v200 = vrcp.pop %v199
      %v201 = vmul.f32 %v197, -0.5
      %v202 = vmul.f32 %v201, %v200
      %v203 = vmul.f32 %v199, 6.2831855
      %v204 = vlog2.pop %v203
      %v205 = vmul.f32 %v204, 0.6931472
      %v206 = vmul.f32 %v205, 512.0
      %v207 = vsub.f32 %v202, %v206
      %vm208 = vcmask 7168
      %v209 = vsel %vm208, %v207, -inf
      %v210 = vrot.slane %v209, 4
      %v211 = vmax.f32 %v209, %v210
      %v212 = vrot.slane %v211, 2
      %v213 = vmax.f32 %v211, %v212
      %v214 = vrot.slane %v213, 1
      %v215 = vmax.f32 %v213, %v214
      %v216 = vsub.f32 %v207, %v215
      %v217 = vmul.f32 %v216, 1.442695
      %v218 = vpow.pop %v217
      %v219 = vsel %vm208, %v218, 0.0
      %v220 = vrot.slane %v219, 4
      %v221 = vadd.f32 %v219, %v220
      %v222 = vrot.slane %v221, 2
      %v223 = vadd.f32 %v221, %v222
      %v224 = vrot.slane %v223, 1
      %v225 = vadd.f32 %v223, %v224
      %v226 = vlog2.pop %v225
      %v227 = vmul.f32 %v226, 0.6931472
      %v228 = vadd.f32 %v215, %v227
      %v229 = vadd.f32 %v228, -2.0794415
      %vm230 = vcmask 0
      %231 = vst.msk [vmem:[#allocation8] sm:$0x1] %vm230, %v229
    $region29: #{tpu_custom_call.1} parent=1 // pred_fallthru
      _
    // Predicated region
    $region30: #{tpu_custom_call.1} parent=1 // pred_check
      _
    $region31: #{tpu_custom_call.1} parent=1 // pred_check_branch
      %233 = sbr.rel (0) target = $region33
    $region32: #{tpu_custom_call.1} parent=1 // pred_region
      %s235 = ssub.s32 16, 16
      %236 = vsyncadd [#allocation5], %s235
      %s238 = sshll.u32 [#allocation8], 4
      %s239 = int_to_ptr.vmem [resolvable:$true] %s238
      %241 = dma.vmem_to_hbm [thread:$0]  %s239, 16, %s3, [#allocation5]
    $region33: #{tpu_custom_call.1} parent=1 // pred_fallthru
      _
    // Predicated region
    $region34: #{tpu_custom_call.1} parent=1 // pred_check
      _
    $region35: #{tpu_custom_call.1} parent=1 // pred_check_branch
      %243 = sbr.rel (0) target = $region37
    $region36: #{tpu_custom_call.1} parent=1 // pred_region
      %244 = dma.done [#allocation5], 16
    $region37: #{tpu_custom_call.1} parent=1 // pred_fallthru
      _
    %245 = vsyncpa [#allocation4], 1
    %246 = vsyncpa [#allocation5], 1
    %247 = vsyncpa [#allocation6], 1

</llo_original>
